<compile_context>
chip_gen: v7x
topology: tpu7x:2x2x1
jax: 0.10.0
libtpu: 0.0.40
codegen_flags: <defaults>
</compile_context>

<pallas_src>
import functools

import jax
import jax.numpy as jnp
from jax.experimental import pallas as pl
from jax.experimental.pallas import tpu as pltpu


def _ceil_div(a, b):
    return -(-a // b)


def _round_up(a, b):
    return _ceil_div(a, b) * b


def _simam_kernel(x_ref, o_ref, *, hw, k, e_lambda):
    # x_ref: (tile_rows, lane) block in VMEM, lane = k * hw.
    # Each row holds k independent channel maps of hw elements (k == 1 usually).
    x = x_ref[...].astype(jnp.float32)

    inv_hw = 1.0 / hw
    inv_n = 1.0 / max(hw - 1, 1)  # clamp hw == 1 (reference divides by zero)

    if k == 1:
        # Whole-row statistics (lane reduction handles any lane masking for
        # hw % 128 != 0 automatically via the logical shape).
        mu = jnp.sum(x, axis=-1, keepdims=True) * inv_hw            # (R, 1)
        d = x - mu
        s = jnp.sum(d * d, axis=-1, keepdims=True)                  # (R, 1)
        denom = 4.0 * (s * inv_n + e_lambda)                        # (R, 1)
        inv = pl.reciprocal(denom, approx=True)                     # EUP
        inv = inv * (2.0 - denom * inv)                             # 1 Newton step
    else:
        # Folded path: k channel maps per row. Segmented reduce / broadcast via
        # tiny matmuls with a 0/1 segment matrix (runs on the idle MXU, keeps
        # everything in the native 2-D lane layout: no in-VMEM reshapes).
        lane = k * hw
        seg = jax.lax.broadcasted_iota(jnp.int32, (lane, k), 0) // hw
        col = jax.lax.broadcasted_iota(jnp.int32, (lane, k), 1)
        S = (seg == col).astype(jnp.float32)                        # (lane, k)
        seg_t = jax.lax.broadcasted_iota(jnp.int32, (k, lane), 1) // hw
        row_t = jax.lax.broadcasted_iota(jnp.int32, (k, lane), 0)
        S_T = (seg_t == row_t).astype(jnp.float32)                  # (k, lane)

        mu_seg = jnp.dot(x, S, preferred_element_type=jnp.float32) * inv_hw  # (R, k)
        mu = jnp.dot(mu_seg, S_T, preferred_element_type=jnp.float32)        # (R, lane)
        d = x - mu
        s_seg = jnp.dot(d * d, S, preferred_element_type=jnp.float32)        # (R, k)
        denom = 4.0 * (s_seg * inv_n + e_lambda)                             # (R, k)
        inv_seg = pl.reciprocal(denom, approx=True)
        inv_seg = inv_seg * (2.0 - denom * inv_seg)
        inv = jnp.dot(inv_seg, S_T, preferred_element_type=jnp.float32)      # (R, lane)

    y = d * d * inv + 0.5
    # sigmoid(y) == 0.5 * tanh(0.5 * y) + 0.5  (single EUP transcendental)
    act = 0.5 * jnp.tanh(0.5 * y) + 0.5
    o_ref[...] = (x * act).astype(o_ref.dtype)


def _choose_tile_rows(rows, lane, itemsize, target_block_bytes):
    """Pick a row-tile: ~target_block_bytes blocks, but keep >= ~8 grid steps."""
    pack = {4: 8, 2: 16, 1: 32}.get(itemsize, 8)
    if rows <= pack:
        # Single block whose row dim equals the full array dim (allowed by the
        # (8,128) rule even if not a multiple of 8).
        return rows
    row_bytes = max(lane, 128) * itemsize
    tile = max(pack, (target_block_bytes // row_bytes) // pack * pack)
    # Cap so the grid has ~>=8 steps: pipelining + both TCs on v7x.
    cap = max(pack, _round_up(_ceil_div(rows, 8), pack))
    tile = min(tile, cap)
    # Never exceed the pack-rounded row count.
    tile = min(tile, _round_up(rows, pack))
    return tile


def simam(x, e_lambda=1e-4, target_block_bytes=1 << 20):
    """SimAM forward. x: (b, c, h, w) NCHW array (f32 or bf16)."""
    b, c, h, w = x.shape
    hw = h * w
    rows = b * c
    dtype = x.dtype
    itemsize = jnp.dtype(dtype).itemsize

    # Fold small spatial maps into lane-dense rows (free reshape) when hw
    # divides 128 and the row count allows it.
    k = 1
    if hw < 128 and 128 % hw == 0:
        kk = 128 // hw
        if rows % kk == 0:
            k = kk
    lane = k * hw
    rows2 = rows // k

    x2d = x.reshape(rows2, lane)

    tile_rows = _choose_tile_rows(rows2, lane, itemsize, target_block_bytes)
    grid = (pl.cdiv(rows2, tile_rows),)  # ragged last block: OOB rows are dropped

    kernel = functools.partial(_simam_kernel, hw=hw, k=k, e_lambda=float(e_lambda))

    out2d = pl.pallas_call(
        kernel,
        out_shape=jax.ShapeDtypeStruct((rows2, lane), dtype),
        grid_spec=pltpu.PrefetchScalarGridSpec(
            num_scalar_prefetch=0,
            grid=grid,
            in_specs=[pl.BlockSpec((tile_rows, lane), lambda i: (i, 0))],
            out_specs=pl.BlockSpec((tile_rows, lane), lambda i: (i, 0)),
        ),
        compiler_params=pltpu.CompilerParams(
            dimension_semantics=("parallel",),
            vmem_limit_bytes=32 * 1024 * 1024,
        ),
        cost_estimate=pl.CostEstimate(
            flops=10 * rows * hw,
            transcendentals=rows * hw,
            bytes_accessed=2 * rows * hw * itemsize,
        ),
    )(x2d)

    return out2d.reshape(b, c, h, w)


def _simam_ref(x, e_lambda=1e-4):
    b, c, h, w = x.shape
    n = w * h - 1
    mu = jnp.mean(x, axis=(2, 3), keepdims=True)
    d2 = (x - mu) ** 2
    y = d2 / (4.0 * (jnp.sum(d2, axis=(2, 3), keepdims=True) / n + e_lambda)) + 0.5
    return x * jax.nn.sigmoid(y)


def _check(shape, key, name):
    x = jax.random.normal(key, shape, dtype=jnp.float32)
    out = jax.block_until_ready(simam(x, e_lambda=1e-4))
    ref = _simam_ref(x, e_lambda=1e-4)
    assert out.shape == shape
    err = float(jnp.max(jnp.abs(out - ref)))
    assert jnp.allclose(out, ref, atol=1e-3, rtol=1e-3), (
        f"{name}: mismatch vs reference (max abs err = {err})"
    )


if __name__ == "__main__":
    key = jax.random.PRNGKey(0)
    k1, k2, k3, k4 = jax.random.split(key, 4)

    # 1) Aligned spatial map (hw = 256, multiple of 128), no folding.
    _check((2, 4, 16, 16), k1, "aligned")

    # 2) Non-multiple-of-128 spatial map (7x7 = 49): block last dim equals the
    #    full array dim, masked tail stores, no wrapper-side padding.
    _check((2, 3, 7, 7), k2, "unaligned_hw")

    # 3) Small spatial map (8x8 = 64): folded path, k = 2 channel maps per
    #    lane-dense row, segmented reductions on the MXU.
    _check((2, 16, 8, 8), k3, "folded")

    # 4) Ragged row count (rows = 15, tile_rows = 8): partial last grid block,
    #    OOB reads are harmless per-row garbage and OOB writes are dropped.
    _check((3, 5, 16, 16), k4, "ragged_rows")

    print("KERNEL_OK")
</pallas_src>

<mosaic_0001>
module attributes {stable_mosaic.version = 11 : i64} {
  func.func @_simam_kernel(%arg0: i32, %arg1: memref<8x256xf32, #tpu.memory_space<vmem>>, %arg2: memref<8x256xf32, #tpu.memory_space<vmem>>) attributes {dimension_semantics = [#tpu.dimension_semantics<parallel>], iteration_bounds = array<i64: 1>, scalar_prefetch = 0 : i64, scratch_operands = 0 : i64, tpu.core_type = #tpu.core_type<tc>, window_params = [{transform_indices = @transform_0, window_bounds = array<i64: 8, 256>}, {transform_indices = @transform_1, window_bounds = array<i64: 8, 256>}]} {
    %c0 = arith.constant 0 : index
    %c0_0 = arith.constant 0 : index
    %0 = vector.load %arg1[%c0, %c0_0] : memref<8x256xf32, #tpu.memory_space<vmem>>, vector<8x256xf32>
    %cst = arith.constant dense<0.000000e+00> : vector<8xf32>
    %1 = vector.multi_reduction <add>, %0, %cst [1] : vector<8x256xf32> to vector<8xf32>
    %2 = vector.shape_cast %1 : vector<8xf32> to vector<8x1xf32>
    %cst_1 = arith.constant 3.906250e-03 : f32
    %3 = vector.broadcast %cst_1 : f32 to vector<8x1xf32>
    %4 = arith.mulf %2, %3 : vector<8x1xf32>
    %5 = vector.broadcast %4 : vector<8x1xf32> to vector<8x256xf32>
    %6 = arith.subf %0, %5 : vector<8x256xf32>
    %7 = arith.mulf %6, %6 : vector<8x256xf32>
    %cst_2 = arith.constant dense<0.000000e+00> : vector<8xf32>
    %8 = vector.multi_reduction <add>, %7, %cst_2 [1] : vector<8x256xf32> to vector<8xf32>
    %9 = vector.shape_cast %8 : vector<8xf32> to vector<8x1xf32>
    %cst_3 = arith.constant 0.00392156886 : f32
    %10 = vector.broadcast %cst_3 : f32 to vector<8x1xf32>
    %11 = arith.mulf %9, %10 : vector<8x1xf32>
    %cst_4 = arith.constant 9.99999974E-5 : f32
    %12 = vector.broadcast %cst_4 : f32 to vector<8x1xf32>
    %13 = arith.addf %11, %12 : vector<8x1xf32>
    %cst_5 = arith.constant 4.000000e+00 : f32
    %14 = vector.broadcast %cst_5 : f32 to vector<8x1xf32>
    %15 = arith.mulf %14, %13 : vector<8x1xf32>
    %16 = tpu.reciprocal %15 {approx = true} : vector<8x1xf32> -> vector<8x1xf32>
    %17 = arith.mulf %15, %16 : vector<8x1xf32>
    %cst_6 = arith.constant 2.000000e+00 : f32
    %18 = vector.broadcast %cst_6 : f32 to vector<8x1xf32>
    %19 = arith.subf %18, %17 : vector<8x1xf32>
    %20 = arith.mulf %16, %19 : vector<8x1xf32>
    %21 = arith.mulf %6, %6 : vector<8x256xf32>
    %22 = vector.broadcast %20 : vector<8x1xf32> to vector<8x256xf32>
    %23 = arith.mulf %21, %22 : vector<8x256xf32>
    %cst_7 = arith.constant 5.000000e-01 : f32
    %24 = vector.broadcast %cst_7 : f32 to vector<8x256xf32>
    %25 = arith.addf %23, %24 : vector<8x256xf32>
    %cst_8 = arith.constant 5.000000e-01 : f32
    %26 = vector.broadcast %cst_8 : f32 to vector<8x256xf32>
    %27 = arith.mulf %26, %25 : vector<8x256xf32>
    %28 = math.tanh %27 : vector<8x256xf32>
    %cst_9 = arith.constant 5.000000e-01 : f32
    %29 = vector.broadcast %cst_9 : f32 to vector<8x256xf32>
    %30 = arith.mulf %29, %28 : vector<8x256xf32>
    %cst_10 = arith.constant 5.000000e-01 : f32
    %31 = vector.broadcast %cst_10 : f32 to vector<8x256xf32>
    %32 = arith.addf %30, %31 : vector<8x256xf32>
    %33 = arith.mulf %0, %32 : vector<8x256xf32>
    %c0_11 = arith.constant 0 : index
    %c0_12 = arith.constant 0 : index
    %34 = vector.load %arg2[%c0_11, %c0_12] : memref<8x256xf32, #tpu.memory_space<vmem>>, vector<8x256xf32>
    tpu.vector_store %arg2[%c0_11, %c0_12], %33 {strides = array<i32>} : memref<8x256xf32, #tpu.memory_space<vmem>>, vector<8x256xf32>,
    return
  }
  func.func @transform_0(%arg0: i32) -> (i32, i32) {
    %c0_i32 = arith.constant 0 : i32
    %c0_i32_0 = arith.constant 0 : i32
    return %arg0, %c0_i32 : i32, i32
  }
  func.func @transform_1(%arg0: i32) -> (i32, i32) {
    %c0_i32 = arith.constant 0 : i32
    %c0_i32_0 = arith.constant 0 : i32
    return %arg0, %c0_i32 : i32, i32
  }
}

</mosaic_0001>

<llo_original>
// kernel: tpu_custom_call.1
$region0: #{tpu_custom_call.1}
  #allocation0 [shape = 'u32[]', space=smem, size = 0x4, offset = 0x4, fixed_abs, tag = 'smem constant byte address 0x4 - core index']
  #allocation1 [shape = 'u32[144,128]{1,0:T(1,128)}', space=vmem, size = 0x12000, scoped, tag = 'internal scratch']
  %s0 = inlined_call_operand.hbm [shape: f32[8,256], index: 0, kind: input, shape index: {}]
  %s1 = inlined_call_operand.hbm [shape: f32[8,256], index: 1, kind: output, shape index: {}]
  %s2 = sld [smem:[#allocation0]]
  $region18: #{tpu_custom_call.1} parent=0
    _
  %s4 = ssub.s32 1, %s2
  %s5 = scalar_select 0, %s4, %s2
  $region1: #{tpu_custom_call.1} parent=0
    #allocation2 [shape = 'u8[8192]{0}', space=vmem, size = 0x2000, scoped, tag = 'input window, operand 0, single buffered']
    #allocation3 [shape = 's32[1]{0}', space=sflag, size = 0x4, scoped, tag = 'scoped memory for tpu_custom_call.1']
    #allocation4 [shape = 's32[1]{0}', space=sflag, size = 0x4, scoped, tag = 'scoped memory for tpu_custom_call.1']
    #allocation5 [shape = 'u8[8192]{0}', space=vmem, size = 0x2000, scoped, tag = 'output window, operand 0, single buffered']
    %6 = vsyncpa [#allocation3], 0
    %7 = vsyncpa [#allocation4], 0
    // Predicated region
    $region2: #{tpu_custom_call.1} parent=1 // pred_check
      _
    $region3: #{tpu_custom_call.1} parent=1 // pred_check_branch
      %9 = sbr.rel (0) target = $region5
    $region4: #{tpu_custom_call.1} parent=1 // pred_region
      %s11 = ssub.s32 256, 256
      %12 = vsyncadd [#allocation3], %s11
      %s14 = sshll.u32 [#allocation2], 4
      %s15 = int_to_ptr.vmem [resolvable:$true] %s14
      %17 = dma.hbm_to_vmem [thread:$0]  %s0, 256, %s15, [#allocation3]
    $region5: #{tpu_custom_call.1} parent=1 // pred_fallthru
      _
    // Predicated region
    $region6: #{tpu_custom_call.1} parent=1 // pred_check
      _
    $region7: #{tpu_custom_call.1} parent=1 // pred_check_branch
      %19 = sbr.rel (0) target = $region9
    $region8: #{tpu_custom_call.1} parent=1 // pred_region
      %20 = dma.done [#allocation3], 256
    $region9: #{tpu_custom_call.1} parent=1 // pred_fallthru
      _
    %v21 = vld [vmem:[#allocation2] sm:$0xff]
    %v22 = vld [vmem:[#allocation2 + $0x8] sm:$0xff]
    %v23 = vadd.f32 %v21, %v22
    %24 = vadd.xlane.f32.xlu0 %v23
    %v25 = vpop.xlane.xlu0 %24
    %v26 = vmul.f32 %v25, 0.00390625
    %v27 = vsub.f32 %v21, %v26
    %v28 = vsub.f32 %v22, %v26
    %v29 = vmul.f32 %v27, %v27
    %v30 = vmul.f32 %v28, %v28
    %v31 = vadd.f32 %v29, %v30
    %32 = vadd.xlane.f32.xlu0 %v31
    %v33 = vpop.xlane.xlu0 %32
    %v34 = vmul.f32 %v33, 0.003921569
    %v35 = vadd.f32 %v34, 0.0001
    %v36 = vmul.f32 %v35, 4.0
    %v37 = vrcp.pop %v36
    %v38 = vmul.f32 %v36, %v37
    %v39 = vsub.f32 2.0, %v38
    %v40 = vmul.f32 %v37, %v39
    %v41 = vmul.f32 %v29, %v40
    %v42 = vmul.f32 %v30, %v40
    %v43 = vadd.f32 %v41, 0.5
    %v44 = vadd.f32 %v42, 0.5
    %v45 = vmul.f32 %v43, 0.5
    %v46 = vmul.f32 %v44, 0.5
    %v47 = vtanh.pop %v45
    %v48 = vtanh.pop %v46
    %v49 = vmul.f32 %v47, 0.5
    %v50 = vmul.f32 %v48, 0.5
    %v51 = vadd.f32 %v49, 0.5
    %v52 = vadd.f32 %v50, 0.5
    %v53 = vmul.f32 %v21, %v51
    %v54 = vmul.f32 %v22, %v52
    %55 = vst [vmem:[#allocation5] sm:$0xff] %v53
    %56 = vst [vmem:[#allocation5 + $0x8] sm:$0xff] %v54
    // Predicated region
    $region10: #{tpu_custom_call.1} parent=1 // pred_check
      _
    $region11: #{tpu_custom_call.1} parent=1 // pred_check_branch
      %58 = sbr.rel (0) target = $region13
    $region12: #{tpu_custom_call.1} parent=1 // pred_region
      %s60 = ssub.s32 256, 256
      %61 = vsyncadd [#allocation4], %s60
      %s63 = sshll.u32 [#allocation5], 4
      %s64 = int_to_ptr.vmem [resolvable:$true] %s63
      %66 = dma.vmem_to_hbm [thread:$0]  %s64, 256, %s1, [#allocation4]
    $region13: #{tpu_custom_call.1} parent=1 // pred_fallthru
      _
    // Predicated region
    $region14: #{tpu_custom_call.1} parent=1 // pred_check
      _
    $region15: #{tpu_custom_call.1} parent=1 // pred_check_branch
      %68 = sbr.rel (0) target = $region17
    $region16: #{tpu_custom_call.1} parent=1 // pred_region
      %69 = dma.done [#allocation4], 256
    $region17: #{tpu_custom_call.1} parent=1 // pred_fallthru
      _
    %70 = vsyncpa [#allocation3], 1
    %71 = vsyncpa [#allocation4], 1

</llo_original>
